<compile_context>
chip_gen: v6e
topology: v6e:2x2x1
jax: 0.10.0
libtpu: 0.0.40
codegen_flags: <defaults>
</compile_context>

<pallas_src>
import functools

import jax
import jax.numpy as jnp
import numpy as np
from jax.experimental import pallas as pl
from jax.experimental.pallas import tpu as pltpu


def _spinn1d_kernel(x_ref, invh_ref, coh_ref, w_ref, b_ref, o_ref,
                    *, use_pu, compute_dtype):
    # x_ref   : (1, TB)   batch on lanes
    # invh_ref: (N, 1)    1 / h
    # coh_ref : (N, 1)    centers / h
    # w_ref   : (N, V)    transposed nn.Linear weight
    # b_ref   : (V, 1)    bias
    # o_ref   : (V, TB)
    x = x_ref[...].astype(compute_dtype)                       # (1, TB)
    invh = invh_ref[...].astype(compute_dtype)                 # (N, 1)
    coh = coh_ref[...].astype(compute_dtype)                   # (N, 1)

    # Shift layer, fused: (x - c) / h == x*(1/h) - c/h   -> (N, TB)
    y = x * invh - coh

    # Activation: gaussian basis exp(-y^2).
    # TODO(synk): the module takes `activation` as an argument; gaussian is hard-coded.
    y = jnp.exp(-(y * y))                                      # (N, TB)
    y_f32 = y.astype(jnp.float32)                              # accumulate in f32

    V = o_ref.shape[0]
    if V <= 8:
        # Tiny output width: VPU multiply + XLU sublane reduce, skip the MXU
        # (the MXU result tile would be >98% padding at these sizes).
        cols = []
        for v in range(V):
            w_col = w_ref[:, v:v + 1]                          # (N, 1) f32
            cols.append(jnp.sum(y_f32 * w_col, axis=0, keepdims=True))  # (1, TB)
        out = cols[0] if V == 1 else jnp.concatenate(cols, axis=0)      # (V, TB)
    else:
        # General V: contract the N (sublane) axis on the MXU -> (V, TB)
        out = jax.lax.dot_general(
            w_ref[...].astype(compute_dtype), y, (((0,), (0,)), ((), ())),
            preferred_element_type=jnp.float32)

    if use_pu:
        # Partition of unity: (y / sum(y)) @ W  ==  (y @ W) / sum(y).
        # (Module's Linear has no bias in PU mode, so bias is correctly ignored.)
        # Per-lane reduction: boundary-padded (dead) lanes never contaminate
        # valid lanes; any inf/nan produced in dead lanes is masked on store.
        denom = jnp.sum(y_f32, axis=0, keepdims=True)          # (1, TB)
        r = pl.reciprocal(denom, approx=True)                  # EUP vrcp
        r = r * (2.0 - denom * r)                              # one Newton step
        out = out * r
    else:
        out = out + b_ref[...]                                 # (V, 1) broadcast
    o_ref[...] = out.astype(o_ref.dtype)


def _round_up(x, m):
    return (x + m - 1) // m * m


def _choose_block_b(B, N, max_block_b):
    # Amortize the ~0.35us per-grid-step overhead with wide tiles, but keep the
    # grid >= 2 steps when possible so the "parallel" batch axis can still be
    # sharded over v7x's two TensorCores.
    bb = min(max_block_b, max(128, _round_up(pl.cdiv(B, 2), 128)))
    # VMEM guard: ~6 live f32 (N, block_b) slabs must stay well under the
    # scoped VMEM limit (v7x: 64 MiB physical / 32 MiB scoped; v5e: 16 MiB
    # default scoped). Budget conservatively at 24 MiB.
    vmem_budget = 24 * 1024 * 1024
    per_lane_bytes = 6 * N * 4
    bb_cap = max(128, (vmem_budget // per_lane_bytes) // 128 * 128)
    return min(bb, bb_cap)


def spinn1d_forward(x, centers, h, weight, bias=None, *, use_pu=False,
                    max_block_b=4096, compute_dtype=jnp.float32):
    """x: (B,), centers: (N,), h: (N,) or scalar, weight: (V, N), bias: (V,).

    compute_dtype=jnp.bfloat16 roughly doubles exp throughput on v6e/v7x (EUP
    is the critical slot) but loosens accuracy; keep f32 on v5e (no bf16 VPU/EUP).
    """
    B = x.shape[0]
    N = centers.shape[0]
    V = weight.shape[0]

    block_b = _choose_block_b(B, N, max_block_b)
    grid_b = pl.cdiv(B, block_b)   # ragged last block -> Pallas masks the store

    x2 = x.astype(jnp.float32).reshape(1, B)                   # free reshape
    h_vec = jnp.broadcast_to(jnp.asarray(h, jnp.float32).reshape(-1), (N,))
    inv_h = (1.0 / h_vec).reshape(N, 1)
    c_over_h = (centers.astype(jnp.float32) / h_vec).reshape(N, 1)
    w2 = weight.T.astype(jnp.float32)                          # (N, V)
    if bias is None:
        bias = jnp.zeros((V,), jnp.float32)
    b2 = bias.astype(jnp.float32).reshape(V, 1)

    kernel = functools.partial(_spinn1d_kernel, use_pu=use_pu,
                               compute_dtype=compute_dtype)

    flops = 2 * N * B + 2 * N * B + 2 * N * V * B              # shift + gauss + dot
    cost = pl.CostEstimate(
        flops=int(flops),
        transcendentals=int(N * B),
        bytes_accessed=int(4 * (B + V * B + 2 * N + N * V + V)))

    out = pl.pallas_call(
        kernel,
        out_shape=jax.ShapeDtypeStruct((V, B), jnp.float32),
        grid_spec=pltpu.PrefetchScalarGridSpec(
            num_scalar_prefetch=0,
            grid=(grid_b,),
            in_specs=[
                pl.BlockSpec((1, block_b), lambda i: (0, i)),   # x   (streamed)
                pl.BlockSpec((N, 1), lambda i: (0, 0)),         # 1/h       (resident)
                pl.BlockSpec((N, 1), lambda i: (0, 0)),         # centers/h (resident)
                pl.BlockSpec((N, V), lambda i: (0, 0)),         # W^T       (resident)
                pl.BlockSpec((V, 1), lambda i: (0, 0)),         # bias      (resident)
            ],
            out_specs=pl.BlockSpec((V, block_b), lambda i: (0, i)),
        ),
        compiler_params=pltpu.CompilerParams(
            dimension_semantics=("parallel",),
            vmem_limit_bytes=32 * 1024 * 1024),
        cost_estimate=cost,
    )(x2, inv_h, c_over_h, w2, b2)

    return jnp.squeeze(out.T)     # matches y.squeeze() in the PyTorch module


def spinn1d_reference(x, centers, h, weight, bias, *, use_pu=False):
    h_vec = jnp.broadcast_to(jnp.asarray(h, jnp.float32).reshape(-1), centers.shape)
    y = (x[:, None] - centers[None, :]) / h_vec[None, :]
    y = jnp.exp(-(y * y))
    if use_pu:
        y = y / jnp.sum(y, axis=1, keepdims=True)
        out = y @ weight.T
    else:
        out = y @ weight.T + bias[None, :]
    return jnp.squeeze(out)


if __name__ == "__main__":
    # Deterministic synthetic parameters matching the module's __init__ shapes.
    n_free, n_fixed = 30, 2
    N = n_free + n_fixed                      # basis nodes
    V = 1                                     # pde.n_vars()
    B = 1000                                  # ragged batch -> exercises Pallas
                                              # boundary masking (2 tiles of 512)

    points = np.linspace(0.0, 1.0, n_free + 2)[1:-1].astype(np.float32)
    fixed_points = np.array([0.0, 1.0], dtype=np.float32)
    xmin = min(points.min(), fixed_points.min())
    xmax = max(points.max(), fixed_points.max())
    dx = (xmax - xmin) / N

    centers = jnp.asarray(np.concatenate([points, fixed_points]))  # (N,)
    h_vec = dx * jnp.ones((N,), jnp.float32)                       # fixed_h=False
    h_scalar = jnp.float32(dx)                                     # fixed_h=True

    # nn.Linear(N, V): module zero-fills weight/bias; use small deterministic
    # random weights instead so the contraction path is exercised.
    key = jax.random.PRNGKey(0)
    kx, kw = jax.random.split(key)
    weight = 0.1 * jax.random.normal(kw, (V, N), jnp.float32)
    bias = jnp.zeros((V,), jnp.float32)

    x = jax.random.uniform(kx, (B,), jnp.float32)

    # Default path: use_pu=False, per-node h.
    out = jax.block_until_ready(
        spinn1d_forward(x, centers, h_vec, weight, bias, use_pu=False))
    ref = spinn1d_reference(x, centers, h_vec, weight, bias, use_pu=False)
    np.testing.assert_allclose(np.asarray(out), np.asarray(ref),
                               rtol=1e-4, atol=1e-5)

    # fixed_h path (scalar h).
    out_fh = jax.block_until_ready(
        spinn1d_forward(x, centers, h_scalar, weight, bias, use_pu=False))
    ref_fh = spinn1d_reference(x, centers, h_scalar, weight, bias, use_pu=False)
    np.testing.assert_allclose(np.asarray(out_fh), np.asarray(ref_fh),
                               rtol=1e-4, atol=1e-5)

    # Partition-of-unity path (no bias, row-sum normalisation).
    out_pu = jax.block_until_ready(
        spinn1d_forward(x, centers, h_vec, weight, bias, use_pu=True))
    ref_pu = spinn1d_reference(x, centers, h_vec, weight, bias, use_pu=True)
    np.testing.assert_allclose(np.asarray(out_pu), np.asarray(ref_pu),
                               rtol=1e-4, atol=1e-5)

    print("KERNEL_OK")
</pallas_src>

<mosaic_0001>
module attributes {stable_mosaic.version = 11 : i64} {
  func.func @_spinn1d_kernel(%arg0: i32, %arg1: memref<1x512xf32, #tpu.memory_space<vmem>>, %arg2: memref<32x1xf32, #tpu.memory_space<vmem>>, %arg3: memref<32x1xf32, #tpu.memory_space<vmem>>, %arg4: memref<32x1xf32, #tpu.memory_space<vmem>>, %arg5: memref<1x1xf32, #tpu.memory_space<vmem>>, %arg6: memref<1x512xf32, #tpu.memory_space<vmem>>) attributes {dimension_semantics = [#tpu.dimension_semantics<parallel>], iteration_bounds = array<i64: 2>, scalar_prefetch = 0 : i64, scratch_operands = 0 : i64, tpu.core_type = #tpu.core_type<tc>, window_params = [{transform_indices = @transform_0, window_bounds = array<i64: 1, 512>}, {pipeline_mode = #tpu.pipeline_mode<synchronous>, transform_indices = @transform_1, window_bounds = array<i64: 32, 1>}, {pipeline_mode = #tpu.pipeline_mode<synchronous>, transform_indices = @transform_2, window_bounds = array<i64: 32, 1>}, {pipeline_mode = #tpu.pipeline_mode<synchronous>, transform_indices = @transform_3, window_bounds = array<i64: 32, 1>}, {pipeline_mode = #tpu.pipeline_mode<synchronous>, transform_indices = @transform_4, window_bounds = array<i64: 1, 1>}, {transform_indices = @transform_5, window_bounds = array<i64: 1, 512>}]} {
    %c0 = arith.constant 0 : index
    %c0_0 = arith.constant 0 : index
    %0 = vector.load %arg1[%c0, %c0_0] : memref<1x512xf32, #tpu.memory_space<vmem>>, vector<1x512xf32>
    %c0_1 = arith.constant 0 : index
    %c0_2 = arith.constant 0 : index
    %1 = vector.load %arg2[%c0_1, %c0_2] : memref<32x1xf32, #tpu.memory_space<vmem>>, vector<32x1xf32>
    %c0_3 = arith.constant 0 : index
    %c0_4 = arith.constant 0 : index
    %2 = vector.load %arg3[%c0_3, %c0_4] : memref<32x1xf32, #tpu.memory_space<vmem>>, vector<32x1xf32>
    %3 = vector.broadcast %0 : vector<1x512xf32> to vector<32x512xf32>
    %4 = vector.broadcast %1 : vector<32x1xf32> to vector<32x512xf32>
    %5 = arith.mulf %3, %4 : vector<32x512xf32>
    %6 = vector.broadcast %2 : vector<32x1xf32> to vector<32x512xf32>
    %7 = arith.subf %5, %6 : vector<32x512xf32>
    %8 = arith.mulf %7, %7 : vector<32x512xf32>
    %cst = arith.constant 0.000000e+00 : f32
    %9 = vector.broadcast %cst : f32 to vector<32x512xf32>
    %10 = arith.subf %9, %8 : vector<32x512xf32>
    %11 = math.exp %10 : vector<32x512xf32>
    %c0_5 = arith.constant 0 : index
    %c0_6 = arith.constant 0 : index
    %12 = vector.load %arg4[%c0_5, %c0_6] : memref<32x1xf32, #tpu.memory_space<vmem>>, vector<32x1xf32>
    %13 = vector.broadcast %12 : vector<32x1xf32> to vector<32x512xf32>
    %14 = arith.mulf %11, %13 : vector<32x512xf32>
    %cst_7 = arith.constant dense<0.000000e+00> : vector<512xf32>
    %15 = vector.multi_reduction <add>, %14, %cst_7 [0] : vector<32x512xf32> to vector<512xf32>
    %16 = vector.shape_cast %15 : vector<512xf32> to vector<1x512xf32>
    %c0_8 = arith.constant 0 : index
    %c0_9 = arith.constant 0 : index
    %17 = vector.load %arg5[%c0_8, %c0_9] : memref<1x1xf32, #tpu.memory_space<vmem>>, vector<1x1xf32>
    %18 = vector.broadcast %17 : vector<1x1xf32> to vector<1x512xf32>
    %19 = arith.addf %16, %18 : vector<1x512xf32>
    %c0_10 = arith.constant 0 : index
    %c0_11 = arith.constant 0 : index
    %20 = vector.load %arg6[%c0_10, %c0_11] : memref<1x512xf32, #tpu.memory_space<vmem>>, vector<1x512xf32>
    tpu.vector_store %arg6[%c0_10, %c0_11], %19 {strides = array<i32>} : memref<1x512xf32, #tpu.memory_space<vmem>>, vector<1x512xf32>,
    return
  }
  func.func @transform_0(%arg0: i32) -> (i32, i32) {
    %c0_i32 = arith.constant 0 : i32
    %c0_i32_0 = arith.constant 0 : i32
    return %c0_i32, %arg0 : i32, i32
  }
  func.func @transform_1(%arg0: i32) -> (i32, i32) {
    %c0_i32 = arith.constant 0 : i32
    %c0_i32_0 = arith.constant 0 : i32
    %c0_i32_1 = arith.constant 0 : i32
    return %c0_i32, %c0_i32_0 : i32, i32
  }
  func.func @transform_2(%arg0: i32) -> (i32, i32) {
    %c0_i32 = arith.constant 0 : i32
    %c0_i32_0 = arith.constant 0 : i32
    %c0_i32_1 = arith.constant 0 : i32
    return %c0_i32, %c0_i32_0 : i32, i32
  }
  func.func @transform_3(%arg0: i32) -> (i32, i32) {
    %c0_i32 = arith.constant 0 : i32
    %c0_i32_0 = arith.constant 0 : i32
    %c0_i32_1 = arith.constant 0 : i32
    return %c0_i32, %c0_i32_0 : i32, i32
  }
  func.func @transform_4(%arg0: i32) -> (i32, i32) {
    %c0_i32 = arith.constant 0 : i32
    %c0_i32_0 = arith.constant 0 : i32
    %c0_i32_1 = arith.constant 0 : i32
    return %c0_i32, %c0_i32_0 : i32, i32
  }
  func.func @transform_5(%arg0: i32) -> (i32, i32) {
    %c0_i32 = arith.constant 0 : i32
    %c0_i32_0 = arith.constant 0 : i32
    return %c0_i32, %arg0 : i32, i32
  }
}

</mosaic_0001>

<llo_original>
// kernel: tpu_custom_call.1
$region0: #{tpu_custom_call.1}
  #allocation0 [shape = 'u32[]', space=smem, size = 0x4, offset = 0x4, fixed_abs, tag = 'smem constant byte address 0x4 - core index']
  #allocation1 [shape = 'u32[144,128]{1,0:T(1,128)}', space=vmem, size = 0x12000, scoped, tag = 'internal scratch']
  #allocation2 [shape = 'f32[1,1]{1,0:T(1,128)S(1)}', space=vmem, size = 0x200, scoped, tag = 'scoped memory for tpu_custom_call.1']
  %s0 = inlined_call_operand.vmem [shape: f32[1,1000], index: 0, kind: input, shape index: {}]
  %s1 = inlined_call_operand.vmem [shape: f32[32,1], index: 1, kind: input, shape index: {}]
  %s2 = inlined_call_operand.vmem [shape: f32[32,1], index: 2, kind: input, shape index: {}]
  %s3 = inlined_call_operand.vmem [shape: f32[32,1], index: 3, kind: input, shape index: {}]
  %s4 = inlined_call_operand.<no memory space> [shape: f32[1,1], index: 4, kind: input, shape index: {}]
  %s5 = inlined_call_operand.hbm [shape: f32[1,1000], index: 5, kind: output, shape index: {}]
  %s6 = sld [smem:[#allocation0]]
  $region53: #{tpu_custom_call.1} parent=0
    _
  %s8 = ssub.s32 1, %s6
  %s9 = scalar_select 0, %s8, %s6
  %v10 = vstv %s4
  %11 = vst [vmem:[#allocation2] sm:$0x1] %v10
  $region1: #{tpu_custom_call.1} parent=0
    #allocation3 [shape = 'u8[4096]{0}', space=vmem, size = 0x1000, scoped, tag = 'output window, operand 0']
    #allocation4 [shape = 's32[2]{0}', space=sflag, size = 0x8, scoped, tag = 'scoped memory for tpu_custom_call.1']
    %12 = vsyncpa [#allocation4], 0
    %s13 = scalar_lea.sflag [#allocation4], 1
    %14 = vsyncpa %s13, 0
    loop: start=0, step=1, limit=4
    $region2: #{tpu_custom_call.1} parent=1 // loop_pre_header
      _
    $region3: #{tpu_custom_call.1} parent=1 // loop_header
      %s16 = sphi 0, %s20
      %p17 = scmp.ge.s32.totalorder %s16, 4
      %s26 = sphi 0, %s28
      %s29 = sphi 0, %s26
      %s30 = sphi 0, %s29
      %s46 = sphi 0, %s30
      %s50 = sphi 0, %s50
      %s52 = sphi 0, %s50
      %s53 = sphi 0, %s52
      %s67 = sphi 0, %s53
      %s71 = sphi 0, %s71
      %s73 = sphi 0, %s71
      %s74 = sphi 0, %s73
      %s88 = sphi 0, %s74
      %s92 = sphi 0, %s92
      %s94 = sphi 0, %s92
      %s95 = sphi 0, %s94
      %s109 = sphi 0, %s95
      %s113 = sphi 0, %s113
      %s115 = sphi 0, %s113
      %s116 = sphi 0, %s115
      %s130 = sphi 0, %s116
      %s136 = sphi 0, %s138
      %s139 = sphi 0, %s136
      %s140 = sphi 0, %s139
      %s156 = sphi 0, %s140
    $region4: #{tpu_custom_call.1} parent=1 // loop_header_branch
      %19 = sbr.rel (%p17) target = $region8
    $region5: #{tpu_custom_call.1} parent=1 // loop_body
      %s21 = ssub.s32 %s16, 1
      %s22 = ssub.s32 %s16, 2
      %s23 = sadd.s32 %s16, 1
      %s24 = ssub.s32 %s16, %s23
      %p25 = scmp.eq.s32.totalorder %s24, 0
      %s27 = sadd.s32 %s26, 1
      %s28 = scalar_select %p25, %s26, %s27
      %p31 = pneg %p25
      %p32 = scmp.eq.s32.totalorder %s16, 1
      %p33 = por %p31, %p32
      %p34 = scmp.ne.s32.totalorder %s26, %s29
      %p35 = scmp.eq.s32.totalorder %s16, 0
      %p36 = por %p34, %p35
      %p37 = scmp.ne.s32.totalorder %s26, %s29
      %p38 = scmp.eq.s32.totalorder %s21, 1
      %p39 = por %p37, %p38
      %p40 = scmp.ne.s32.totalorder %s29, %s30
      %p41 = scmp.eq.s32.totalorder %s21, 0
      %p42 = por %p40, %p41
      %p43 = scmp.ne.s32.totalorder %s29, %s30
      %p44 = scmp.eq.s32.totalorder %s22, 1
      %p45 = por %p43, %p44
      %p47 = scmp.ne.s32.totalorder %s30, %s46
      %p48 = scmp.eq.s32.totalorder %s22, 0
      %p49 = por %p47, %p48
      %s51 = sadd.s32 %s50, 1
      %p54 = scmp.eq.s32.totalorder %s16, 1
      %p55 = scmp.ne.s32.totalorder %s50, %s52
      %p56 = scmp.eq.s32.totalorder %s16, 0
      %p57 = por %p55, %p56
      %p58 = scmp.ne.s32.totalorder %s50, %s52
      %p59 = scmp.eq.s32.totalorder %s21, 1
      %p60 = por %p58, %p59
      %p61 = scmp.ne.s32.totalorder %s52, %s53
      %p62 = scmp.eq.s32.totalorder %s21, 0
      %p63 = por %p61, %p62
      %p64 = scmp.ne.s32.totalorder %s52, %s53
      %p65 = scmp.eq.s32.totalorder %s22, 1
      %p66 = por %p64, %p65
      %p68 = scmp.ne.s32.totalorder %s53, %s67
      %p69 = scmp.eq.s32.totalorder %s22, 0
      %p70 = por %p68, %p69
      %s72 = sadd.s32 %s71, 1
      %p75 = scmp.eq.s32.totalorder %s16, 1
      %p76 = scmp.ne.s32.totalorder %s71, %s73
      %p77 = scmp.eq.s32.totalorder %s16, 0
      %p78 = por %p76, %p77
      %p79 = scmp.ne.s32.totalorder %s71, %s73
      %p80 = scmp.eq.s32.totalorder %s21, 1
      %p81 = por %p79, %p80
      %p82 = scmp.ne.s32.totalorder %s73, %s74
      %p83 = scmp.eq.s32.totalorder %s21, 0
      %p84 = por %p82, %p83
      %p85 = scmp.ne.s32.totalorder %s73, %s74
      %p86 = scmp.eq.s32.totalorder %s22, 1
      %p87 = por %p85, %p86
      %p89 = scmp.ne.s32.totalorder %s74, %s88
      %p90 = scmp.eq.s32.totalorder %s22, 0
      %p91 = por %p89, %p90
      %s93 = sadd.s32 %s92, 1
      %p96 = scmp.eq.s32.totalorder %s16, 1
      %p97 = scmp.ne.s32.totalorder %s92, %s94
      %p98 = scmp.eq.s32.totalorder %s16, 0
      %p99 = por %p97, %p98
      %p100 = scmp.ne.s32.totalorder %s92, %s94
      %p101 = scmp.eq.s32.totalorder %s21, 1
      %p102 = por %p100, %p101
      %p103 = scmp.ne.s32.totalorder %s94, %s95
      %p104 = scmp.eq.s32.totalorder %s21, 0
      %p105 = por %p103, %p104
      %p106 = scmp.ne.s32.totalorder %s94, %s95
      %p107 = scmp.eq.s32.totalorder %s22, 1
      %p108 = por %p106, %p107
      %p110 = scmp.ne.s32.totalorder %s95, %s109
      %p111 = scmp.eq.s32.totalorder %s22, 0
      %p112 = por %p110, %p111
      %s114 = sadd.s32 %s113, 1
      %p117 = scmp.eq.s32.totalorder %s16, 1
      %p118 = scmp.ne.s32.totalorder %s113, %s115
      %p119 = scmp.eq.s32.totalorder %s16, 0
      %p120 = por %p118, %p119
      %p121 = scmp.ne.s32.totalorder %s113, %s115
      %p122 = scmp.eq.s32.totalorder %s21, 1
      %p123 = por %p121, %p122
      %p124 = scmp.ne.s32.totalorder %s115, %s116
      %p125 = scmp.eq.s32.totalorder %s21, 0
      %p126 = por %p124, %p125
      %p127 = scmp.ne.s32.totalorder %s115, %s116
      %p128 = scmp.eq.s32.totalorder %s22, 1
      %p129 = por %p127, %p128
      %p131 = scmp.ne.s32.totalorder %s116, %s130
      %p132 = scmp.eq.s32.totalorder %s22, 0
      %p133 = por %p131, %p132
      %s134 = ssub.s32 %s16, %s23
      %p135 = scmp.eq.s32.totalorder %s134, 0
      %s137 = sadd.s32 %s136, 1
      %s138 = scalar_select %p135, %s136, %s137
      %p141 = pneg %p135
      %p142 = scmp.eq.s32.totalorder %s16, 1
      %p143 = por %p141, %p142
      %p144 = scmp.ne.s32.totalorder %s136, %s139
      %p145 = scmp.eq.s32.totalorder %s16, 0
      %p146 = por %p144, %p145
      %p147 = scmp.ne.s32.totalorder %s136, %s139
      %p148 = scmp.eq.s32.totalorder %s21, 1
      %p149 = por %p147, %p148
      %p150 = scmp.ne.s32.totalorder %s139, %s140
      %p151 = scmp.eq.s32.totalorder %s21, 0
      %p152 = por %p150, %p151
      %p153 = scmp.ne.s32.totalorder %s139, %s140
      %p154 = scmp.eq.s32.totalorder %s22, 1
      %p155 = por %p153, %p154
      %p157 = scmp.ne.s32.totalorder %s140, %s156
      %p158 = scmp.eq.s32.totalorder %s22, 0
      %p159 = por %p157, %p158
      %p160 = scmp.le.s32.totalorder 1, %s16
      %p161 = scmp.lt.s32.totalorder %s16, 3
      %p162 = pnand %p160, %p161
      %p163 = pneg %p162
      // Predicated region
      $region9: #{tpu_custom_call.1} parent=5 // pred_check
        _
      $region10: #{tpu_custom_call.1} parent=5 // pred_check_branch
        %165 = sbr.rel (%p162) target = $region12
      $region11: #{tpu_custom_call.1} parent=5 // pred_region
        %s166 = ssub.s32 %s16, 1
        // Predicated region
        $region13: #{tpu_custom_call.1} parent=11 // pred_check
          %p167 = pneg %p63
        $region14: #{tpu_custom_call.1} parent=11 // pred_check_branch
          %169 = sbr.rel (%p167) target = $region16
        $region15: #{tpu_custom_call.1} parent=11 // pred_region
          _
        $region16: #{tpu_custom_call.1} parent=11 // pred_fallthru
          _
        // Predicated region
        $region17: #{tpu_custom_call.1} parent=11 // pred_check
          %p170 = pneg %p84
        $region18: #{tpu_custom_call.1} parent=11 // pred_check_branch
          %172 = sbr.rel (%p170) target = $region20
        $region19: #{tpu_custom_call.1} parent=11 // pred_region
          _
        $region20: #{tpu_custom_call.1} parent=11 // pred_fallthru
          _
        // Predicated region
        $region21: #{tpu_custom_call.1} parent=11 // pred_check
          %p173 = pneg %p105
        $region22: #{tpu_custom_call.1} parent=11 // pred_check_branch
          %175 = sbr.rel (%p173) target = $region24
        $region23: #{tpu_custom_call.1} parent=11 // pred_region
          _
        $region24: #{tpu_custom_call.1} parent=11 // pred_fallthru
          _
        // Predicated region
        $region25: #{tpu_custom_call.1} parent=11 // pred_check
          %p176 = pneg %p126
        $region26: #{tpu_custom_call.1} parent=11 // pred_check_branch
          %178 = sbr.rel (%p176) target = $region28
        $region27: #{tpu_custom_call.1} parent=11 // pred_region
          _
        $region28: #{tpu_custom_call.1} parent=11 // pred_fallthru
          _
      $region12: #{tpu_custom_call.1} parent=5 // pred_fallthru
        _
      %p179 = scmp.lt.s32.totalorder %s16, 2
      // Predicated region
      $region29: #{tpu_custom_call.1} parent=5 // pred_check
        %p180 = pneg %p179
      $region30: #{tpu_custom_call.1} parent=5 // pred_check_branch
        %182 = sbr.rel (%p180) target = $region32
      $region31: #{tpu_custom_call.1} parent=5 // pred_region
        // Predicated region
        $region33: #{tpu_custom_call.1} parent=31 // pred_check
          %p183 = pneg %p36
        $region34: #{tpu_custom_call.1} parent=31 // pred_check_branch
          %185 = sbr.rel (%p183) target = $region36
        $region35: #{tpu_custom_call.1} parent=31 // pred_region
          %s186 = smul.u32 4, %s16
          %p187 = scmp.lt.s32.totalorder %s186, 7
          %s188 = scalar_select %p187, %s186, 7
          %s189 = scalar_lea.vmem %s0, %s188
          %s190 = smul.u32 4, %s16
        $region36: #{tpu_custom_call.1} parent=31 // pred_fallthru
          _
      $region32: #{tpu_custom_call.1} parent=5 // pred_fallthru
        _
      %p191 = scmp.le.s32.totalorder 1, %s16
      %p192 = scmp.lt.s32.totalorder %s16, 3
      %p193 = pnand %p191, %p192
      %p194 = pneg %p193
      // Predicated region
      $region37: #{tpu_custom_call.1} parent=5 // pred_check
        _
      $region38: #{tpu_custom_call.1} parent=5 // pred_check_branch
        %196 = sbr.rel (%p193) target = $region40
      $region39: #{tpu_custom_call.1} parent=5 // pred_region
        %s197 = ssub.s32 %s16, 1
        %s198 = smul.u32 4, %s21
        %p199 = scmp.lt.s32.totalorder %s198, 7
        %s200 = scalar_select %p199, %s198, 7
        %s201 = scalar_lea.vmem %s0, %s200
        %p202 = pneg %p42
        %p203 = pneg %p39
        %p204 = pneg %p63
        %p205 = pneg %p60
        %p206 = pneg %p84
        %p207 = pneg %p81
        %p208 = pneg %p105
        %p209 = pneg %p102
        %p210 = pneg %p126
        %p211 = pneg %p123
        %p212 = pneg %p152
        %p213 = pneg %p149
        %s214 = sand.u32 %s139, 1
        %s215 = scalar_lea.sflag [#allocation4], %s214
        %s216 = sand.u32 %s139, 1
        %s217 = smul.addr %s216, 4
        %s218 = scalar_lea.vmem [#allocation3], %s217
        %s219 = smul.u32 4, %s21
        %p220 = scmp.lt.s32.totalorder %s219, 7
        %s221 = scalar_select %p220, %s219, 7
        %s222 = scalar_lea.vmem %s0, %s221
        %s223 = smul.u32 4, %s21
        %s224 = smul.u32 4, %s21
        %v225 = vld [vmem:[%s222] sm:$0xf]
        %v226 = vld [vmem:[%s1] sm:$0xff]
        %v227 = vld [vmem:[%s1 + $0x8] sm:$0xff]
        %v228 = vld [vmem:[%s1 + $0x10] sm:$0xff]
        %v229 = vld [vmem:[%s1 + $0x18] sm:$0xff]
        %v230 = vld [vmem:[%s2] sm:$0xff]
        %v231 = vld [vmem:[%s2 + $0x8] sm:$0xff]
        %v232 = vld [vmem:[%s2 + $0x10] sm:$0xff]
        %v233 = vld [vmem:[%s2 + $0x18] sm:$0xff]
        %v235 = vlaneseq
        %v236 = vshrl.u32 %v235, 7
        %v237 = vsub.s32 0, %v236
        %v238 = vrot.slane %v225, %v237
        %v239 = vlaneseq
        %v240 = vshrl.u32 %v239, 7
        %v241 = vsub.s32 1, %v240
        %v242 = vrot.slane %v225, %v241
        %v243 = vlaneseq
        %v244 = vshrl.u32 %v243, 7
        %v245 = vsub.s32 2, %v244
        %v246 = vrot.slane %v225, %v245
        %v247 = vlaneseq
        %v248 = vshrl.u32 %v247, 7
        %v249 = vsub.s32 3, %v248
        %v250 = vrot.slane %v225, %v249
        %256 = vset.pattern.permute.xlu0 0
        %257 = vperm.xlu0 %256, %v226
        %v258 = vpop.permute.xlu0 %257
        %261 = vset.pattern.permute.xlu0 0
        %262 = vperm.xlu0 %261, %v227
        %v263 = vpop.permute.xlu0 %262
        %266 = vset.pattern.permute.xlu0 0
        %267 = vperm.xlu0 %266, %v228
        %v268 = vpop.permute.xlu0 %267
        %271 = vset.pattern.permute.xlu0 0
        %272 = vperm.xlu0 %271, %v229
        %v273 = vpop.permute.xlu0 %272
        %v275 = vmul.f32 %v238, %v258
        %v276 = vmul.f32 %v242, %v258
        %v277 = vmul.f32 %v246, %v258
        %v278 = vmul.f32 %v250, %v258
        %v279 = vmul.f32 %v238, %v263
        %v280 = vmul.f32 %v242, %v263
        %v281 = vmul.f32 %v246, %v263
        %v282 = vmul.f32 %v250, %v263
        %v283 = vmul.f32 %v238, %v268
        %v284 = vmul.f32 %v242, %v268
        %v285 = vmul.f32 %v246, %v268
        %v286 = vmul.f32 %v250, %v268
        %v287 = vmul.f32 %v238, %v273
        %v288 = vmul.f32 %v242, %v273
        %v289 = vmul.f32 %v246, %v273
        %v290 = vmul.f32 %v250, %v273
        %292 = vset.pattern.permute.xlu0 0
        %293 = vperm.xlu0 %292, %v230
        %v294 = vpop.permute.xlu0 %293
        %297 = vset.pattern.permute.xlu0 0
        %298 = vperm.xlu0 %297, %v231
        %v299 = vpop.permute.xlu0 %298
        %302 = vset.pattern.permute.xlu0 0
        %303 = vperm.xlu0 %302, %v232
        %v304 = vpop.permute.xlu0 %303
        %307 = vset.pattern.permute.xlu0 0
        %308 = vperm.xlu0 %307, %v233
        %v309 = vpop.permute.xlu0 %308
        %v311 = vsub.f32 %v275, %v294
        %v312 = vsub.f32 %v276, %v294
        %v313 = vsub.f32 %v277, %v294
        %v314 = vsub.f32 %v278, %v294
        %v315 = vsub.f32 %v279, %v299
        %v316 = vsub.f32 %v280, %v299
        %v317 = vsub.f32 %v281, %v299
        %v318 = vsub.f32 %v282, %v299
        %v319 = vsub.f32 %v283, %v304
        %v320 = vsub.f32 %v284, %v304
        %v321 = vsub.f32 %v285, %v304
        %v322 = vsub.f32 %v286, %v304
        %v323 = vsub.f32 %v287, %v309
        %v324 = vsub.f32 %v288, %v309
        %v325 = vsub.f32 %v289, %v309
        %v326 = vsub.f32 %v290, %v309
        %v327 = vmul.f32 %v311, %v311
        %v328 = vmul.f32 %v312, %v312
        %v329 = vmul.f32 %v313, %v313
        %v330 = vmul.f32 %v314, %v314
        %v331 = vmul.f32 %v315, %v315
        %v332 = vmul.f32 %v316, %v316
        %v333 = vmul.f32 %v317, %v317
        %v334 = vmul.f32 %v318, %v318
        %v335 = vmul.f32 %v319, %v319
        %v336 = vmul.f32 %v320, %v320
        %v337 = vmul.f32 %v321, %v321
        %v338 = vmul.f32 %v322, %v322
        %v339 = vmul.f32 %v323, %v323
        %v340 = vmul.f32 %v324, %v324
        %v341 = vmul.f32 %v325, %v325
        %v342 = vmul.f32 %v326, %v326
        %v343 = vsub.f32 0.0, %v327
        %v344 = vsub.f32 0.0, %v328
        %v345 = vsub.f32 0.0, %v329
        %v346 = vsub.f32 0.0, %v330
        %v347 = vsub.f32 0.0, %v331
        %v348 = vsub.f32 0.0, %v332
        %v349 = vsub.f32 0.0, %v333
        %v350 = vsub.f32 0.0, %v334
        %v351 = vsub.f32 0.0, %v335
        %v352 = vsub.f32 0.0, %v336
        %v353 = vsub.f32 0.0, %v337
        %v354 = vsub.f32 0.0, %v338
        %v355 = vsub.f32 0.0, %v339
        %v356 = vsub.f32 0.0, %v340
        %v357 = vsub.f32 0.0, %v341
        %v358 = vsub.f32 0.0, %v342
        %v359 = vmul.f32 %v343, 1.442695
        %v360 = vpow.pop %v359
        %v361 = vmul.f32 %v344, 1.442695
        %v362 = vpow.pop %v361
        %v363 = vmul.f32 %v345, 1.442695
        %v364 = vpow.pop %v363
        %v365 = vmul.f32 %v346, 1.442695
        %v366 = vpow.pop %v365
        %v367 = vmul.f32 %v347, 1.442695
        %v368 = vpow.pop %v367
        %v369 = vmul.f32 %v348, 1.442695
        %v370 = vpow.pop %v369
        %v371 = vmul.f32 %v349, 1.442695
        %v372 = vpow.pop %v371
        %v373 = vmul.f32 %v350, 1.442695
        %v374 = vpow.pop %v373
        %v375 = vmul.f32 %v351, 1.442695
        %v376 = vpow.pop %v375
        %v377 = vmul.f32 %v352, 1.442695
        %v378 = vpow.pop %v377
        %v379 = vmul.f32 %v353, 1.442695
        %v380 = vpow.pop %v379
        %v381 = vmul.f32 %v354, 1.442695
        %v382 = vpow.pop %v381
        %v383 = vmul.f32 %v355, 1.442695
        %v384 = vpow.pop %v383
        %v385 = vmul.f32 %v356, 1.442695
        %v386 = vpow.pop %v385
        %v387 = vmul.f32 %v357, 1.442695
        %v388 = vpow.pop %v387
        %v389 = vmul.f32 %v358, 1.442695
        %v390 = vpow.pop %v389
        %v391 = vld [vmem:[%s3] sm:$0xff]
        %v392 = vld [vmem:[%s3 + $0x8] sm:$0xff]
        %v393 = vld [vmem:[%s3 + $0x10] sm:$0xff]
        %v394 = vld [vmem:[%s3 + $0x18] sm:$0xff]
        %396 = vset.pattern.permute.xlu0 0
        %397 = vperm.xlu0 %396, %v391
        %v398 = vpop.permute.xlu0 %397
        %401 = vset.pattern.permute.xlu0 0
        %402 = vperm.xlu0 %401, %v392
        %v403 = vpop.permute.xlu0 %402
        %406 = vset.pattern.permute.xlu0 0
        %407 = vperm.xlu0 %406, %v393
        %v408 = vpop.permute.xlu0 %407
        %411 = vset.pattern.permute.xlu0 0
        %412 = vperm.xlu0 %411, %v394
        %v413 = vpop.permute.xlu0 %412
        %v415 = vmul.f32 %v360, %v398
        %v416 = vmul.f32 %v362, %v398
        %v417 = vmul.f32 %v364, %v398
        %v418 = vmul.f32 %v366, %v398
        %v419 = vmul.f32 %v368, %v403
        %v420 = vmul.f32 %v370, %v403
        %v421 = vmul.f32 %v372, %v403
        %v422 = vmul.f32 %v374, %v403
        %v423 = vmul.f32 %v376, %v408
        %v424 = vmul.f32 %v378, %v408
        %v425 = vmul.f32 %v380, %v408
        %v426 = vmul.f32 %v382, %v408
        %v427 = vmul.f32 %v384, %v413
        %v428 = vmul.f32 %v386, %v413
        %v429 = vmul.f32 %v388, %v413
        %v430 = vmul.f32 %v390, %v413
        %v431 = vadd.f32 %v415, %v419
        %v432 = vadd.f32 %v431, %v423
        %v433 = vadd.f32 %v432, %v427
        %v434 = vrot.slane %v433, 4
        %v435 = vadd.f32 %v433, %v434
        %v436 = vrot.slane %v435, 2
        %v437 = vadd.f32 %v435, %v436
        %v438 = vrot.slane %v437, 1
        %v439 = vadd.f32 %v437, %v438
        %v440 = vadd.f32 %v416, %v420
        %v441 = vadd.f32 %v440, %v424
        %v442 = vadd.f32 %v441, %v428
        %v443 = vrot.slane %v442, 4
        %v444 = vadd.f32 %v442, %v443
        %v445 = vrot.slane %v444, 2
        %v446 = vadd.f32 %v444, %v445
        %v447 = vrot.slane %v446, 1
        %v448 = vadd.f32 %v446, %v447
        %v449 = vadd.f32 %v417, %v421
        %v450 = vadd.f32 %v449, %v425
        %v451 = vadd.f32 %v450, %v429
        %v452 = vrot.slane %v451, 4
        %v453 = vadd.f32 %v451, %v452
        %v454 = vrot.slane %v453, 2
        %v455 = vadd.f32 %v453, %v454
        %v456 = vrot.slane %v455, 1
        %v457 = vadd.f32 %v455, %v456
        %v458 = vadd.f32 %v418, %v422
        %v459 = vadd.f32 %v458, %v426
        %v460 = vadd.f32 %v459, %v430
        %v461 = vrot.slane %v460, 4
        %v462 = vadd.f32 %v460, %v461
        %v463 = vrot.slane %v462, 2
        %v464 = vadd.f32 %v462, %v463
        %v465 = vrot.slane %v464, 1
        %v466 = vadd.f32 %v464, %v465
        %v467 = vld [vmem:[#allocation2] sm:$0x1]
        %469 = vset.pattern.permute.xlu0 0
        %470 = vperm.xlu0 %469, %v467
        %v471 = vpop.permute.xlu0 %470
        %v473 = vlaneseq
        %v474 = vshrl.u32 %v473, 7
        %v475 = vsub.s32 0, %v474
        %v476 = vrot.slane %v471, %v475
        %v477 = vadd.f32 %v439, %v476
        %v478 = vadd.f32 %v448, %v476
        %v479 = vadd.f32 %v457, %v476
        %v480 = vadd.f32 %v466, %v476
        %v485 = vcombine.low %v477, %v478
        %v486 = vcombine.low %v479, %v480
        %v488 = vunpack.c.l.s4 1966171168
        %v489 = vunpack.c.0.s8 %v488
        %v490 = vlaneseq
        %v491 = vshrl.u32 %v490, 7
        %v492 = vsub.s32 %v489, %v491
        %v493 = vrot.slane %v485, %v492
        %v495 = vunpack.c.l.s4 1966171168
        %v496 = vunpack.c.0.s8 %v495
        %v497 = vlaneseq
        %v498 = vshrl.u32 %v497, 7
        %v499 = vsub.s32 %v496, %v498
        %v500 = vrot.slane %v486, %v499
        %v501 = vcombine.low %v493, %v500
        %v503 = vunpack.c.l.s4 1966171168
        %v504 = vunpack.c.0.s8 %v503
        %v505 = vlaneseq
        %v506 = vshrl.u32 %v505, 7
        %v507 = vsub.s32 %v504, %v506
        %v508 = vrot.slane %v501, %v507
        %v510 = vlaneseq
        %vm511 = vcmp.ge.s32.totalorder %v510, 0
        %vm512 = vcmp.lt.s32.totalorder %v510, 512
        %vm513 = vmand %vm511, %vm512
        %514 = vst.msk [vmem:[%s218] sm:$0xf] %vm513, %v508
        %s515 = sand.u32 %s139, 1
        %s516 = scalar_lea.sflag [#allocation4], %s515
        %s517 = sand.u32 %s139, 1
        %s518 = smul.addr %s517, 4
        %s519 = scalar_lea.vmem [#allocation3], %s518
        // Predicated region
        $region41: #{tpu_custom_call.1} parent=39 // pred_check
          %p520 = pneg %p149
        $region42: #{tpu_custom_call.1} parent=39 // pred_check_branch
          %522 = sbr.rel (%p520) target = $region44
        $region43: #{tpu_custom_call.1} parent=39 // pred_region
          %s523 = smul.u32 4, %s21
          %s525 = ssub.s32 64, 64
          %526 = vsyncadd %s516, %s525
          %s527 = smul.addr %s523, 16
          %s528 = scalar_lea.hbm %s5, %s527
          %s530 = sshll.u32 %s519, 4
          %s531 = int_to_ptr.vmem [resolvable:$true] %s530
          %533 = dma.vmem_to_hbm [thread:$0]  %s531, 64, %s528, %s516
        $region44: #{tpu_custom_call.1} parent=39 // pred_fallthru
          _
      $region40: #{tpu_custom_call.1} parent=5 // pred_fallthru
        _
      %p534 = scmp.le.s32.totalorder 2, %s16
      // Predicated region
      $region45: #{tpu_custom_call.1} parent=5 // pred_check
        %p535 = pneg %p534
      $region46: #{tpu_custom_call.1} parent=5 // pred_check_branch
        %537 = sbr.rel (%p535) target = $region48
      $region47: #{tpu_custom_call.1} parent=5 // pred_region
        %s538 = ssub.s32 %s16, 2
        // Predicated region
        $region49: #{tpu_custom_call.1} parent=47 // pred_check
          %p539 = pneg %p155
        $region50: #{tpu_custom_call.1} parent=47 // pred_check_branch
          %541 = sbr.rel (%p539) target = $region52
        $region51: #{tpu_custom_call.1} parent=47 // pred_region
          %s542 = sand.u32 %s140, 1
          %s543 = scalar_lea.sflag [#allocation4], %s542
          %s544 = sand.u32 %s140, 1
          %s545 = smul.addr %s544, 4
          %s546 = scalar_lea.vmem [#allocation3], %s545
          %547 = dma.done %s543, 64
        $region52: #{tpu_custom_call.1} parent=47 // pred_fallthru
          _
      $region48: #{tpu_custom_call.1} parent=5 // pred_fallthru
        _
    $region6: #{tpu_custom_call.1} parent=1 // loop_footer
      %s20 = sadd.s32 1, %s16
    $region7: #{tpu_custom_call.1} parent=1 // loop_footer_branch
      %15 = sbr.rel target = $region3
    $region8: #{tpu_custom_call.1} parent=1 // loop_exit
      _
    %548 = vsyncpa [#allocation4], 1
    %s549 = scalar_lea.sflag [#allocation4], 1
    %550 = vsyncpa %s549, 1

</llo_original>
